<compile_context>
chip_gen: v7x
topology: tpu7x:2x2x1
jax: 0.10.0
libtpu: 0.0.40
codegen_flags: <defaults>
</compile_context>

<pallas_src>
import functools

import jax
import jax.numpy as jnp
from jax.experimental import pallas as pl
from jax.experimental.pallas import tpu as pltpu

_LANES = 128
_SUBLANES = 8
# Only bother sharding across v7x's two TensorCores when there is at least
# this much data per pass (below this, per-step overhead dominates).
_MIN_SPLIT_BYTES = 512 * 1024


@functools.lru_cache(maxsize=1)
def _tpu_config():
    """Per-chip tuning: (num TensorCores, target bytes per block buffer, vmem limit)."""
    try:
        kind = jax.devices()[0].device_kind.lower()
    except Exception:  # pragma: no cover - be conservative if introspection fails
        kind = ""
    if "7" in kind:
        # v7x: 2 TCs/chip, 64 MiB VMEM, 3.2 TB/s HBM -> big blocks, raise scoped VMEM.
        return {"num_tc": 2, "block_bytes": 8 * 1024 * 1024,
                "vmem_limit": 48 * 1024 * 1024}
    # v5e / v6e / unknown: 1 TC, keep 4 buffers (~8 MiB) under the 16 MiB default
    # scoped VMEM so we never regress v5e.
    return {"num_tc": 1, "block_bytes": 2 * 1024 * 1024, "vmem_limit": None}


def _make_clamp_min_kernel(min_val):
    """Return a kernel with `min_val` baked in as a compile-time constant."""

    def _clamp_min_kernel(x_ref, o_ref):
        o_ref[...] = jnp.maximum(
            x_ref[...], jnp.asarray(min_val, dtype=o_ref.dtype)
        )

    return _clamp_min_kernel


def _choose_blocks(rows, itemsize, num_tc, block_bytes):
    """Pick (block_rows, grid_len) for a (rows, 128) layout.

    - dtype-aware sublane alignment (8 f32 / 16 bf16 / 32 int8),
    - byte-targeted block size,
    - balanced, even-length grid when sharding across multiple TensorCores,
    - single full block (no grid overhead) when splitting buys nothing.
    """
    sublane = max(_SUBLANES, 32 // max(1, itemsize))
    max_block_rows = max(
        sublane, (block_bytes // (_LANES * itemsize)) // sublane * sublane
    )
    total_bytes = rows * _LANES * itemsize
    want_split = num_tc > 1 and total_bytes >= _MIN_SPLIT_BYTES

    if rows <= max_block_rows and not want_split:
        # One block covering the full array (full-dim exception to the (8,128)
        # divisibility rule), zero per-step pipeline overhead.
        return rows, 1

    n_blocks = pl.cdiv(rows, max_block_rows)
    if want_split:
        # Round the block count up to a multiple of the TC count so the
        # "parallel" grid axis splits evenly across cores.
        n_blocks = ((n_blocks + num_tc - 1) // num_tc) * num_tc
    block_rows = ((pl.cdiv(rows, n_blocks) + sublane - 1) // sublane) * sublane
    # (block_rows may exceed max_block_rows by < sublane rows; that is a few KiB
    # and preferable to re-capping, which would re-create a tiny ragged tail.)
    grid_len = pl.cdiv(rows, block_rows)
    return block_rows, grid_len


@functools.partial(jax.jit, static_argnames=("min_val",))
def _clamp_min_jit(x, *, min_val):
    orig_shape = x.shape
    dtype = x.dtype
    n = x.size
    if n == 0:
        return x

    itemsize = jnp.dtype(dtype).itemsize
    cfg = _tpu_config()

    x_flat = x.reshape(-1)
    n_aligned = (n // _LANES) * _LANES

    if n_aligned == 0:
        # Fewer than 128 elements: a kernel launch is pure overhead.
        return jnp.maximum(x_flat, jnp.asarray(min_val, dtype)).reshape(orig_shape)

    rows = n_aligned // _LANES
    block_rows, grid_len = _choose_blocks(
        rows, itemsize, cfg["num_tc"], cfg["block_bytes"]
    )

    x2d = x_flat[:n_aligned].reshape(rows, _LANES)

    out2d = pl.pallas_call(
        _make_clamp_min_kernel(min_val),
        out_shape=jax.ShapeDtypeStruct((rows, _LANES), dtype),
        grid_spec=pltpu.PrefetchScalarGridSpec(
            num_scalar_prefetch=0,
            grid=(grid_len,),
            in_specs=[
                pl.BlockSpec((block_rows, _LANES), lambda i: (i, 0)),
            ],
            out_specs=pl.BlockSpec((block_rows, _LANES), lambda i: (i, 0)),
        ),
        compiler_params=pltpu.CompilerParams(
            dimension_semantics=("parallel",),
            vmem_limit_bytes=cfg["vmem_limit"],
        ),
        cost_estimate=pl.CostEstimate(
            flops=n_aligned,
            transcendentals=0,
            bytes_accessed=2 * n_aligned * itemsize,
        ),
    )(x2d)

    out_flat = out2d.reshape(-1)
    if n_aligned != n:
        # Handle the <128-element tail with a tiny VPU max instead of padding
        # and re-slicing the whole tensor (saves a full extra HBM pass).
        tail = jnp.maximum(x_flat[n_aligned:], jnp.asarray(min_val, dtype))
        out_flat = jnp.concatenate([out_flat, tail])
    return out_flat.reshape(orig_shape)


def clamp_min(x: jax.Array, min_val) -> jax.Array:
    """Elementwise torch.clamp_min(x, min_val) via a Pallas TPU kernel."""
    return _clamp_min_jit(x, min_val=min_val)


if __name__ == "__main__":
    key = jax.random.PRNGKey(0)
    # Small NCHW-shaped input, consistent with typical torch_glow test tensors.
    x = jax.random.normal(key, (2, 4, 16, 16), dtype=jnp.float32)
    min_val = 0.25  # the module's `min` hyperparameter

    y = clamp_min(x, min_val)
    jax.block_until_ready(y)

    # Correctness check against plain JAX reference (torch.clamp_min semantics).
    y_ref = jnp.maximum(x, jnp.float32(min_val))
    assert y.shape == x.shape and y.dtype == x.dtype
    assert jnp.array_equal(y, y_ref), "mismatch vs reference clamp_min"

    print("KERNEL_OK")
</pallas_src>

<mosaic_0001>
module attributes {stable_mosaic.version = 11 : i64} {
  func.func @_clamp_min_kernel(%arg0: i32, %arg1: memref<16x128xf32, #tpu.memory_space<vmem>>, %arg2: memref<16x128xf32, #tpu.memory_space<vmem>>) attributes {dimension_semantics = [#tpu.dimension_semantics<parallel>], iteration_bounds = array<i64: 1>, scalar_prefetch = 0 : i64, scratch_operands = 0 : i64, tpu.core_type = #tpu.core_type<tc>, window_params = [{transform_indices = @transform_0, window_bounds = array<i64: 16, 128>}, {transform_indices = @transform_1, window_bounds = array<i64: 16, 128>}]} {
    %c0 = arith.constant 0 : index
    %c0_0 = arith.constant 0 : index
    %0 = vector.load %arg1[%c0, %c0_0] : memref<16x128xf32, #tpu.memory_space<vmem>>, vector<16x128xf32>
    %cst = arith.constant 2.500000e-01 : f32
    %1 = vector.broadcast %cst : f32 to vector<16x128xf32>
    %2 = arith.maximumf %0, %1 : vector<16x128xf32>
    %c0_1 = arith.constant 0 : index
    %c0_2 = arith.constant 0 : index
    %3 = vector.load %arg2[%c0_1, %c0_2] : memref<16x128xf32, #tpu.memory_space<vmem>>, vector<16x128xf32>
    tpu.vector_store %arg2[%c0_1, %c0_2], %2 {strides = array<i32>} : memref<16x128xf32, #tpu.memory_space<vmem>>, vector<16x128xf32>,
    return
  }
  func.func @transform_0(%arg0: i32) -> (i32, i32) {
    %c0_i32 = arith.constant 0 : i32
    %c0_i32_0 = arith.constant 0 : i32
    return %arg0, %c0_i32 : i32, i32
  }
  func.func @transform_1(%arg0: i32) -> (i32, i32) {
    %c0_i32 = arith.constant 0 : i32
    %c0_i32_0 = arith.constant 0 : i32
    return %arg0, %c0_i32 : i32, i32
  }
}

</mosaic_0001>

<llo_original>
// kernel: _clamp_min_jit.1
$region0: #{_clamp_min_jit.1}
  #allocation0 [shape = 'u32[]', space=smem, size = 0x4, offset = 0x4, fixed_abs, tag = 'smem constant byte address 0x4 - core index']
  #allocation1 [shape = 'u32[144,128]{1,0:T(1,128)}', space=vmem, size = 0x12000, scoped, tag = 'internal scratch']
  %s0 = inlined_call_operand.vmem [shape: f32[16,128], index: 0, kind: input, shape index: {}]
  %s1 = inlined_call_operand.vmem [shape: f32[16,128], index: 1, kind: output, shape index: {}]
  %s2 = sld [smem:[#allocation0]]
  $region14: #{_clamp_min_jit.1} parent=0
    _
  %s4 = ssub.s32 1, %s2
  %s5 = scalar_select 0, %s4, %s2
  // Predicated region
  $region2: #{_clamp_min_jit.1} parent=0 // pred_check
    _
  $region3: #{_clamp_min_jit.1} parent=0 // pred_check_branch
    %7 = sbr.rel (0) target = $region5
  $region4: #{_clamp_min_jit.1} parent=0 // pred_region
    _
  $region5: #{_clamp_min_jit.1} parent=0 // pred_fallthru
    _
  %v8 = vld [vmem:[%s0] sm:$0xff]
  %v9 = vld [vmem:[%s0 + $0x8] sm:$0xff]
  %v10 = vmax.f32 %v8, 0.25
  %v11 = vmax.f32 %v9, 0.25
  %12 = vst [vmem:[%s1] sm:$0xff] %v10
  %13 = vst [vmem:[%s1 + $0x8] sm:$0xff] %v11
  // Predicated region
  $region6: #{_clamp_min_jit.1} parent=0 // pred_check
    _
  $region7: #{_clamp_min_jit.1} parent=0 // pred_check_branch
    %15 = sbr.rel (0) target = $region9
  $region8: #{_clamp_min_jit.1} parent=0 // pred_region
    _
  $region9: #{_clamp_min_jit.1} parent=0 // pred_fallthru
    _
  // Predicated region
  $region10: #{_clamp_min_jit.1} parent=0 // pred_check
    _
  $region11: #{_clamp_min_jit.1} parent=0 // pred_check_branch
    %17 = sbr.rel (0) target = $region13
  $region12: #{_clamp_min_jit.1} parent=0 // pred_region
    _
  $region13: #{_clamp_min_jit.1} parent=0 // pred_fallthru
    _

</llo_original>
